<compile_context>
chip_gen: v7x
topology: tpu7x:2x2x1
jax: 0.10.0
libtpu: 0.0.40
codegen_flags: <defaults>
</compile_context>

<pallas_src>
import jax
import jax.numpy as jnp
from jax.experimental import pallas as pl
from jax.experimental.pallas import tpu as pltpu


def _round_up(x: int, m: int) -> int:
    return ((x + m - 1) // m) * m


def _mlp2_kernel(u_ref, p_ref, w1_ref, b1_ref, w2_ref, b2_ref, o_ref):
    # u_ref, p_ref : (D_pad, TE)  bf16 gathered edge features, edges on lanes
    # w1_ref       : (H, D_pad)   bf16, PyTorch layout (no transpose needed)
    # b1_ref       : (H, 1)       f32
    # w2_ref       : (8, H)       bf16; row 0 = lin_cls_2.weight, rows 1..7 = 0
    # b2_ref       : (1, 1)       f32
    # o_ref        : (1, TE)      f32 lane-dense output row
    x = u_ref[...] * p_ref[...]                                       # VPU (bf16)
    h = jnp.dot(w1_ref[...], x, preferred_element_type=jnp.float32)   # MXU (H, TE)
    h = jnp.maximum(h + b1_ref[...], 0.0)                             # bias + ReLU
    # Second layer on the MXU (it has plenty of slack): (8,H) @ (H,TE) -> (8,TE);
    # only row 0 of the LHS is non-zero, so row 0 of the result is the answer.
    hb = h.astype(jnp.bfloat16)
    o8 = jnp.dot(w2_ref[...], hb, preferred_element_type=jnp.float32)
    o = o8[0:1, :] + b2_ref[...]                                      # (1, TE)
    o_ref[...] = o.astype(o_ref.dtype)


def mlp2layers_v1(x_user, x_prod, edge_label_index, w1, b1, w2, b2, *, tile_e=1024):
    """Equivalent of MLP2LayersV1.forward.

    x_user: (N_user, D), x_prod: (N_prod, D), edge_label_index: (2, E) int
    w1: (H, D), b1: (H,), w2: (1, H), b2: (1,)
    returns: (E,) float32
    """
    D = x_user.shape[1]
    H = w1.shape[0]
    E = edge_label_index.shape[1]

    if E == 0:                                   # zero-size grid guard
        return jnp.zeros((0,), jnp.float32)

    # --- Tile sizing: lane-dense edge tiles (multiple of 128).  Cap the tile
    # so small problems still get >=2 grid steps (megacore sharding) without
    # excessive padding; large E gets the full requested tile.
    tile_req = max(128, _round_up(int(tile_e), 128))
    tile_cap = max(128, _round_up(-(-E // 2), 128)) if E > 128 else 128
    tile_e = min(tile_req, tile_cap)
    E_pad = _round_up(E, tile_e)
    D_pad = _round_up(D, 16)                     # bf16 packs sublanes in pairs

    # --- Glue: pad indices (node 0 is always valid), gather straight into the
    # kernel's (D_pad, E_pad) layout from the pre-transposed tiny node tables
    # (no separate big-transpose HBM round trip), streams in bf16.
    idx = edge_label_index.astype(jnp.int32)
    if E_pad != E:
        idx = jnp.pad(idx, ((0, 0), (0, E_pad - E)))
    xu_t = x_user.astype(jnp.bfloat16).T                      # (D, N_user)
    xp_t = x_prod.astype(jnp.bfloat16).T                      # (D, N_prod)
    if D_pad != D:
        xu_t = jnp.pad(xu_t, ((0, D_pad - D), (0, 0)))
        xp_t = jnp.pad(xp_t, ((0, D_pad - D), (0, 0)))
    u_t = jnp.take(xu_t, idx[0], axis=1)                      # (D_pad, E_pad) bf16
    p_t = jnp.take(xp_t, idx[1], axis=1)                      # (D_pad, E_pad) bf16

    # --- Parameter layout massaging.
    w1_p = w1.astype(jnp.bfloat16)
    if D_pad != D:
        w1_p = jnp.pad(w1_p, ((0, 0), (0, D_pad - D)))        # (H, D_pad)
    b1_c = b1.reshape(H, 1).astype(jnp.float32)               # (H, 1)
    w2_p = jnp.pad(w2.reshape(1, H).astype(jnp.bfloat16), ((0, 7), (0, 0)))  # (8, H)
    b2_c = b2.reshape(1, 1).astype(jnp.float32)               # (1, 1)

    grid = (E_pad // tile_e,)

    out = pl.pallas_call(
        _mlp2_kernel,
        out_shape=jax.ShapeDtypeStruct((1, E_pad), jnp.float32),
        grid_spec=pltpu.PrefetchScalarGridSpec(
            num_scalar_prefetch=0,
            grid=grid,
            in_specs=[
                pl.BlockSpec((D_pad, tile_e), lambda i: (0, i)),  # user feat tile
                pl.BlockSpec((D_pad, tile_e), lambda i: (0, i)),  # prod feat tile
                pl.BlockSpec((H, D_pad), lambda i: (0, 0)),       # W1 (resident)
                pl.BlockSpec((H, 1), lambda i: (0, 0)),           # b1
                pl.BlockSpec((8, H), lambda i: (0, 0)),           # w2 rows
                pl.BlockSpec((1, 1), lambda i: (0, 0)),           # b2
            ],
            out_specs=pl.BlockSpec((1, tile_e), lambda i: (0, i)),  # lane-dense out
        ),
        compiler_params=pltpu.CompilerParams(
            dimension_semantics=("parallel",),
            vmem_limit_bytes=48 * 1024 * 1024,   # <= v7x physical 64 MiB
        ),
    )(u_t, p_t, w1_p, b1_c, w2_p, b2_c)

    # .squeeze() in the PyTorch module removes the trailing size-1 dim.
    return out.reshape(E_pad)[:E]


def _reference(x_user, x_prod, edge_label_index, w1, b1, w2, b2):
    u = x_user[edge_label_index[0]]
    p = x_prod[edge_label_index[1]]
    out = u * p
    out = jnp.maximum(
        jnp.dot(out, w1.T, precision=jax.lax.Precision.HIGHEST) + b1, 0.0)
    out = jnp.dot(out, w2.T, precision=jax.lax.Precision.HIGHEST) + b2
    return out.reshape(-1)


if __name__ == "__main__":
    key = jax.random.PRNGKey(0)
    k1, k2, k3, k4, k5, k6, k7 = jax.random.split(key, 7)

    # Small shapes consistent with the module (hidden_dim default = 256).
    N_USER, N_PROD = 20, 12
    D = 64          # input_dim
    H = 256         # hidden_dim
    E = 300         # not a multiple of 128 -> exercises padding; tile clamp -> 2 steps

    x_user = jax.random.normal(k1, (N_USER, D), dtype=jnp.float32)
    x_prod = jax.random.normal(k2, (N_PROD, D), dtype=jnp.float32)
    edge_label_index = jnp.stack(
        [
            jax.random.randint(k3, (E,), 0, N_USER, dtype=jnp.int32),
            jax.random.randint(k4, (E,), 0, N_PROD, dtype=jnp.int32),
        ],
        axis=0,
    )  # (2, E)

    # PyTorch Linear shapes: W1 (H, D), b1 (H,), W2 (1, H), b2 (1,)
    w1 = jax.random.normal(k5, (H, D), dtype=jnp.float32) * 0.1
    b1 = jax.random.normal(k6, (H,), dtype=jnp.float32) * 0.1
    w2 = jax.random.normal(k7, (1, H), dtype=jnp.float32) * 0.1
    b2 = jnp.zeros((1,), dtype=jnp.float32)

    fwd = jax.jit(mlp2layers_v1)
    out = jax.block_until_ready(fwd(x_user, x_prod, edge_label_index, w1, b1, w2, b2))

    ref = _reference(x_user, x_prod, edge_label_index, w1, b1, w2, b2)
    assert out.shape == (E,)
    # bf16-streamed operands -> looser tolerance than the pure-f32 variant.
    assert jnp.allclose(out, ref, atol=5e-2, rtol=5e-2), (
        "mismatch vs reference, max abs err = %f"
        % float(jnp.max(jnp.abs(out - ref))))

    print("KERNEL_OK")
</pallas_src>

<mosaic_0001>
module attributes {stable_mosaic.version = 11 : i64} {
  func.func @_mlp2_kernel(%arg0: i32, %arg1: memref<64x256xbf16, #tpu.memory_space<vmem>>, %arg2: memref<64x256xbf16, #tpu.memory_space<vmem>>, %arg3: memref<256x64xbf16, #tpu.memory_space<vmem>>, %arg4: memref<256x1xf32, #tpu.memory_space<vmem>>, %arg5: memref<8x256xbf16, #tpu.memory_space<vmem>>, %arg6: memref<1x1xf32, #tpu.memory_space<vmem>>, %arg7: memref<1x256xf32, #tpu.memory_space<vmem>>) attributes {dimension_semantics = [#tpu.dimension_semantics<parallel>], iteration_bounds = array<i64: 2>, scalar_prefetch = 0 : i64, scratch_operands = 0 : i64, tpu.core_type = #tpu.core_type<tc>, window_params = [{transform_indices = @transform_0, window_bounds = array<i64: 64, 256>}, {transform_indices = @transform_1, window_bounds = array<i64: 64, 256>}, {pipeline_mode = #tpu.pipeline_mode<synchronous>, transform_indices = @transform_2, window_bounds = array<i64: 256, 64>}, {pipeline_mode = #tpu.pipeline_mode<synchronous>, transform_indices = @transform_3, window_bounds = array<i64: 256, 1>}, {pipeline_mode = #tpu.pipeline_mode<synchronous>, transform_indices = @transform_4, window_bounds = array<i64: 8, 256>}, {pipeline_mode = #tpu.pipeline_mode<synchronous>, transform_indices = @transform_5, window_bounds = array<i64: 1, 1>}, {transform_indices = @transform_6, window_bounds = array<i64: 1, 256>}]} {
    %c0 = arith.constant 0 : index
    %c0_0 = arith.constant 0 : index
    %0 = vector.load %arg1[%c0, %c0_0] : memref<64x256xbf16, #tpu.memory_space<vmem>>, vector<64x256xbf16>
    %c0_1 = arith.constant 0 : index
    %c0_2 = arith.constant 0 : index
    %1 = vector.load %arg2[%c0_1, %c0_2] : memref<64x256xbf16, #tpu.memory_space<vmem>>, vector<64x256xbf16>
    %2 = arith.mulf %0, %1 : vector<64x256xbf16>
    %c0_3 = arith.constant 0 : index
    %c0_4 = arith.constant 0 : index
    %3 = vector.load %arg3[%c0_3, %c0_4] : memref<256x64xbf16, #tpu.memory_space<vmem>>, vector<256x64xbf16>
    %cst = arith.constant dense<0.000000e+00> : vector<256x256xf32>
    %4 = tpu.matmul %3, %2, %cst {dimension_numbers = #tpu.dot_dimension_numbers<[1], [0], [0], [1], [0, 0, 1, 1], [], []>} : vector<256x64xbf16>, vector<64x256xbf16>, vector<256x256xf32> -> vector<256x256xf32>
    %c0_5 = arith.constant 0 : index
    %c0_6 = arith.constant 0 : index
    %5 = vector.load %arg4[%c0_5, %c0_6] : memref<256x1xf32, #tpu.memory_space<vmem>>, vector<256x1xf32>
    %6 = vector.broadcast %5 : vector<256x1xf32> to vector<256x256xf32>
    %7 = arith.addf %4, %6 : vector<256x256xf32>
    %cst_7 = arith.constant 0.000000e+00 : f32
    %8 = vector.broadcast %cst_7 : f32 to vector<256x256xf32>
    %9 = arith.maximumf %7, %8 : vector<256x256xf32>
    %10 = arith.truncf %9 : vector<256x256xf32> to vector<256x256xbf16>
    %c0_8 = arith.constant 0 : index
    %c0_9 = arith.constant 0 : index
    %11 = vector.load %arg5[%c0_8, %c0_9] : memref<8x256xbf16, #tpu.memory_space<vmem>>, vector<8x256xbf16>
    %cst_10 = arith.constant dense<0.000000e+00> : vector<8x256xf32>
    %12 = tpu.matmul %11, %10, %cst_10 {dimension_numbers = #tpu.dot_dimension_numbers<[1], [0], [0], [1], [0, 0, 1, 1], [], []>} : vector<8x256xbf16>, vector<256x256xbf16>, vector<8x256xf32> -> vector<8x256xf32>
    %13 = vector.extract_strided_slice %12 {offsets = [0, 0], sizes = [1, 256], strides = [1, 1]} : vector<8x256xf32> to vector<1x256xf32>
    %c0_11 = arith.constant 0 : index
    %c0_12 = arith.constant 0 : index
    %14 = vector.load %arg6[%c0_11, %c0_12] : memref<1x1xf32, #tpu.memory_space<vmem>>, vector<1x1xf32>
    %15 = vector.broadcast %14 : vector<1x1xf32> to vector<1x256xf32>
    %16 = arith.addf %13, %15 : vector<1x256xf32>
    %c0_13 = arith.constant 0 : index
    %c0_14 = arith.constant 0 : index
    %17 = vector.load %arg7[%c0_13, %c0_14] : memref<1x256xf32, #tpu.memory_space<vmem>>, vector<1x256xf32>
    tpu.vector_store %arg7[%c0_13, %c0_14], %16 {strides = array<i32>} : memref<1x256xf32, #tpu.memory_space<vmem>>, vector<1x256xf32>,
    return
  }
  func.func @transform_0(%arg0: i32) -> (i32, i32) {
    %c0_i32 = arith.constant 0 : i32
    %c0_i32_0 = arith.constant 0 : i32
    return %c0_i32, %arg0 : i32, i32
  }
  func.func @transform_1(%arg0: i32) -> (i32, i32) {
    %c0_i32 = arith.constant 0 : i32
    %c0_i32_0 = arith.constant 0 : i32
    return %c0_i32, %arg0 : i32, i32
  }
  func.func @transform_2(%arg0: i32) -> (i32, i32) {
    %c0_i32 = arith.constant 0 : i32
    %c0_i32_0 = arith.constant 0 : i32
    %c0_i32_1 = arith.constant 0 : i32
    return %c0_i32, %c0_i32_0 : i32, i32
  }
  func.func @transform_3(%arg0: i32) -> (i32, i32) {
    %c0_i32 = arith.constant 0 : i32
    %c0_i32_0 = arith.constant 0 : i32
    %c0_i32_1 = arith.constant 0 : i32
    return %c0_i32, %c0_i32_0 : i32, i32
  }
  func.func @transform_4(%arg0: i32) -> (i32, i32) {
    %c0_i32 = arith.constant 0 : i32
    %c0_i32_0 = arith.constant 0 : i32
    %c0_i32_1 = arith.constant 0 : i32
    return %c0_i32, %c0_i32_0 : i32, i32
  }
  func.func @transform_5(%arg0: i32) -> (i32, i32) {
    %c0_i32 = arith.constant 0 : i32
    %c0_i32_0 = arith.constant 0 : i32
    %c0_i32_1 = arith.constant 0 : i32
    return %c0_i32, %c0_i32_0 : i32, i32
  }
  func.func @transform_6(%arg0: i32) -> (i32, i32) {
    %c0_i32 = arith.constant 0 : i32
    %c0_i32_0 = arith.constant 0 : i32
    return %c0_i32, %arg0 : i32, i32
  }
}

</mosaic_0001>

<llo_original>
// kernel: mlp2layers_v1.1
$region0: #{mlp2layers_v1.1}
  #allocation0 [shape = 'u32[]', space=smem, size = 0x4, offset = 0x4, fixed_abs, tag = 'smem constant byte address 0x4 - core index']
  #allocation1 [shape = 'u32[144,128]{1,0:T(1,128)}', space=vmem, size = 0x12000, scoped, tag = 'internal scratch']
  #allocation2 [shape = 'f32[1,1]{1,0:T(1,128)S(1)}', space=vmem, size = 0x200, scoped, tag = 'scoped memory for mlp2layers_v1.1']
  %s0 = inlined_call_operand.vmem [shape: bf16[64,512], index: 0, kind: input, shape index: {}]
  %s1 = inlined_call_operand.vmem [shape: bf16[64,512], index: 1, kind: input, shape index: {}]
  %s2 = inlined_call_operand.vmem [shape: bf16[256,64], index: 2, kind: input, shape index: {}]
  %s3 = inlined_call_operand.vmem [shape: f32[256,1], index: 3, kind: input, shape index: {}]
  %s4 = inlined_call_operand.vmem [shape: bf16[8,256], index: 4, kind: input, shape index: {}]
  %s5 = inlined_call_operand.<no memory space> [shape: f32[1,1], index: 5, kind: input, shape index: {}]
  %s6 = inlined_call_operand.vmem [shape: f32[1,512], index: 6, kind: output, shape index: {}]
  %s7 = sld [smem:[#allocation0]]
  $region133: #{mlp2layers_v1.1} parent=0
    _
  %s9 = ssub.s32 1, %s7
  %s10 = scalar_select 0, %s9, %s7
  %v11 = vstv %s5
  %12 = vst [vmem:[#allocation2] sm:$0x1] %v11
  $region1: #{mlp2layers_v1.1} parent=0
    #allocation3 [shape = 'u8[65536]{0}', space=vmem, size = 0x10000, scoped, tag = 'input window, operand 0']
    #allocation4 [shape = 'u8[65536]{0}', space=vmem, size = 0x10000, scoped, tag = 'input window, operand 1']
    loop: start=0, step=1, limit=4
    $region2: #{mlp2layers_v1.1} parent=1 // loop_pre_header
      _
    $region3: #{mlp2layers_v1.1} parent=1 // loop_header
      %s14 = sphi 0, %s18
      %p15 = scmp.ge.s32.totalorder %s14, 4
      %s24 = sphi 0, %s26
      %s27 = sphi 0, %s24
      %s28 = sphi 0, %s27
      %s44 = sphi 0, %s28
      %s50 = sphi 0, %s52
      %s53 = sphi 0, %s50
      %s54 = sphi 0, %s53
      %s70 = sphi 0, %s54
      %s74 = sphi 0, %s74
      %s76 = sphi 0, %s74
      %s77 = sphi 0, %s76
      %s91 = sphi 0, %s77
      %s95 = sphi 0, %s95
      %s97 = sphi 0, %s95
      %s98 = sphi 0, %s97
      %s112 = sphi 0, %s98
      %s116 = sphi 0, %s116
      %s118 = sphi 0, %s116
      %s119 = sphi 0, %s118
      %s133 = sphi 0, %s119
      %s137 = sphi 0, %s137
      %s139 = sphi 0, %s137
      %s140 = sphi 0, %s139
      %s154 = sphi 0, %s140
      %s160 = sphi 0, %s162
      %s163 = sphi 0, %s160
      %s164 = sphi 0, %s163
      %s180 = sphi 0, %s164
    $region4: #{mlp2layers_v1.1} parent=1 // loop_header_branch
      %17 = sbr.rel (%p15) target = $region8
    $region5: #{mlp2layers_v1.1} parent=1 // loop_body
      %s19 = ssub.s32 %s14, 1
      %s20 = ssub.s32 %s14, 2
      %s21 = sadd.s32 %s14, 1
      %s22 = ssub.s32 %s14, %s21
      %p23 = scmp.eq.s32.totalorder %s22, 0
      %s25 = sadd.s32 %s24, 1
      %s26 = scalar_select %p23, %s24, %s25
      %p29 = pneg %p23
      %p30 = scmp.eq.s32.totalorder %s14, 1
      %p31 = por %p29, %p30
      %p32 = scmp.ne.s32.totalorder %s24, %s27
      %p33 = scmp.eq.s32.totalorder %s14, 0
      %p34 = por %p32, %p33
      %p35 = scmp.ne.s32.totalorder %s24, %s27
      %p36 = scmp.eq.s32.totalorder %s19, 1
      %p37 = por %p35, %p36
      %p38 = scmp.ne.s32.totalorder %s27, %s28
      %p39 = scmp.eq.s32.totalorder %s19, 0
      %p40 = por %p38, %p39
      %p41 = scmp.ne.s32.totalorder %s27, %s28
      %p42 = scmp.eq.s32.totalorder %s20, 1
      %p43 = por %p41, %p42
      %p45 = scmp.ne.s32.totalorder %s28, %s44
      %p46 = scmp.eq.s32.totalorder %s20, 0
      %p47 = por %p45, %p46
      %s48 = ssub.s32 %s14, %s21
      %p49 = scmp.eq.s32.totalorder %s48, 0
      %s51 = sadd.s32 %s50, 1
      %s52 = scalar_select %p49, %s50, %s51
      %p55 = pneg %p49
      %p56 = scmp.eq.s32.totalorder %s14, 1
      %p57 = por %p55, %p56
      %p58 = scmp.ne.s32.totalorder %s50, %s53
      %p59 = scmp.eq.s32.totalorder %s14, 0
      %p60 = por %p58, %p59
      %p61 = scmp.ne.s32.totalorder %s50, %s53
      %p62 = scmp.eq.s32.totalorder %s19, 1
      %p63 = por %p61, %p62
      %p64 = scmp.ne.s32.totalorder %s53, %s54
      %p65 = scmp.eq.s32.totalorder %s19, 0
      %p66 = por %p64, %p65
      %p67 = scmp.ne.s32.totalorder %s53, %s54
      %p68 = scmp.eq.s32.totalorder %s20, 1
      %p69 = por %p67, %p68
      %p71 = scmp.ne.s32.totalorder %s54, %s70
      %p72 = scmp.eq.s32.totalorder %s20, 0
      %p73 = por %p71, %p72
      %s75 = sadd.s32 %s74, 1
      %p78 = scmp.eq.s32.totalorder %s14, 1
      %p79 = scmp.ne.s32.totalorder %s74, %s76
      %p80 = scmp.eq.s32.totalorder %s14, 0
      %p81 = por %p79, %p80
      %p82 = scmp.ne.s32.totalorder %s74, %s76
      %p83 = scmp.eq.s32.totalorder %s19, 1
      %p84 = por %p82, %p83
      %p85 = scmp.ne.s32.totalorder %s76, %s77
      %p86 = scmp.eq.s32.totalorder %s19, 0
      %p87 = por %p85, %p86
      %p88 = scmp.ne.s32.totalorder %s76, %s77
      %p89 = scmp.eq.s32.totalorder %s20, 1
      %p90 = por %p88, %p89
      %p92 = scmp.ne.s32.totalorder %s77, %s91
      %p93 = scmp.eq.s32.totalorder %s20, 0
      %p94 = por %p92, %p93
      %s96 = sadd.s32 %s95, 1
      %p99 = scmp.eq.s32.totalorder %s14, 1
      %p100 = scmp.ne.s32.totalorder %s95, %s97
      %p101 = scmp.eq.s32.totalorder %s14, 0
      %p102 = por %p100, %p101
      %p103 = scmp.ne.s32.totalorder %s95, %s97
      %p104 = scmp.eq.s32.totalorder %s19, 1
      %p105 = por %p103, %p104
      %p106 = scmp.ne.s32.totalorder %s97, %s98
      %p107 = scmp.eq.s32.totalorder %s19, 0
      %p108 = por %p106, %p107
      %p109 = scmp.ne.s32.totalorder %s97, %s98
      %p110 = scmp.eq.s32.totalorder %s20, 1
      %p111 = por %p109, %p110
      %p113 = scmp.ne.s32.totalorder %s98, %s112
      %p114 = scmp.eq.s32.totalorder %s20, 0
      %p115 = por %p113, %p114
      %s117 = sadd.s32 %s116, 1
      %p120 = scmp.eq.s32.totalorder %s14, 1
      %p121 = scmp.ne.s32.totalorder %s116, %s118
      %p122 = scmp.eq.s32.totalorder %s14, 0
      %p123 = por %p121, %p122
      %p124 = scmp.ne.s32.totalorder %s116, %s118
      %p125 = scmp.eq.s32.totalorder %s19, 1
      %p126 = por %p124, %p125
      %p127 = scmp.ne.s32.totalorder %s118, %s119
      %p128 = scmp.eq.s32.totalorder %s19, 0
      %p129 = por %p127, %p128
      %p130 = scmp.ne.s32.totalorder %s118, %s119
      %p131 = scmp.eq.s32.totalorder %s20, 1
      %p132 = por %p130, %p131
      %p134 = scmp.ne.s32.totalorder %s119, %s133
      %p135 = scmp.eq.s32.totalorder %s20, 0
      %p136 = por %p134, %p135
      %s138 = sadd.s32 %s137, 1
      %p141 = scmp.eq.s32.totalorder %s14, 1
      %p142 = scmp.ne.s32.totalorder %s137, %s139
      %p143 = scmp.eq.s32.totalorder %s14, 0
      %p144 = por %p142, %p143
      %p145 = scmp.ne.s32.totalorder %s137, %s139
      %p146 = scmp.eq.s32.totalorder %s19, 1
      %p147 = por %p145, %p146
      %p148 = scmp.ne.s32.totalorder %s139, %s140
      %p149 = scmp.eq.s32.totalorder %s19, 0
      %p150 = por %p148, %p149
      %p151 = scmp.ne.s32.totalorder %s139, %s140
      %p152 = scmp.eq.s32.totalorder %s20, 1
      %p153 = por %p151, %p152
      %p155 = scmp.ne.s32.totalorder %s140, %s154
      %p156 = scmp.eq.s32.totalorder %s20, 0
      %p157 = por %p155, %p156
      %s158 = ssub.s32 %s14, %s21
      %p159 = scmp.eq.s32.totalorder %s158, 0
      %s161 = sadd.s32 %s160, 1
      %s162 = scalar_select %p159, %s160, %s161
      %p165 = pneg %p159
      %p166 = scmp.eq.s32.totalorder %s14, 1
      %p167 = por %p165, %p166
      %p168 = scmp.ne.s32.totalorder %s160, %s163
      %p169 = scmp.eq.s32.totalorder %s14, 0
      %p170 = por %p168, %p169
      %p171 = scmp.ne.s32.totalorder %s160, %s163
      %p172 = scmp.eq.s32.totalorder %s19, 1
      %p173 = por %p171, %p172
      %p174 = scmp.ne.s32.totalorder %s163, %s164
      %p175 = scmp.eq.s32.totalorder %s19, 0
      %p176 = por %p174, %p175
      %p177 = scmp.ne.s32.totalorder %s163, %s164
      %p178 = scmp.eq.s32.totalorder %s20, 1
      %p179 = por %p177, %p178
      %p181 = scmp.ne.s32.totalorder %s164, %s180
      %p182 = scmp.eq.s32.totalorder %s20, 0
      %p183 = por %p181, %p182
      %p184 = scmp.le.s32.totalorder 1, %s14
      %p185 = scmp.lt.s32.totalorder %s14, 3
      %p186 = pnand %p184, %p185
      %p187 = pneg %p186
      // Predicated region
      $region9: #{mlp2layers_v1.1} parent=5 // pred_check
        _
      $region10: #{mlp2layers_v1.1} parent=5 // pred_check_branch
        %189 = sbr.rel (%p186) target = $region12
      $region11: #{mlp2layers_v1.1} parent=5 // pred_region
        %s190 = ssub.s32 %s14, 1
        // Predicated region
        $region13: #{mlp2layers_v1.1} parent=11 // pred_check
          %p191 = pneg %p87
        $region14: #{mlp2layers_v1.1} parent=11 // pred_check_branch
          %193 = sbr.rel (%p191) target = $region16
        $region15: #{mlp2layers_v1.1} parent=11 // pred_region
          _
        $region16: #{mlp2layers_v1.1} parent=11 // pred_fallthru
          _
        // Predicated region
        $region17: #{mlp2layers_v1.1} parent=11 // pred_check
          %p194 = pneg %p108
        $region18: #{mlp2layers_v1.1} parent=11 // pred_check_branch
          %196 = sbr.rel (%p194) target = $region20
        $region19: #{mlp2layers_v1.1} parent=11 // pred_region
          _
        $region20: #{mlp2layers_v1.1} parent=11 // pred_fallthru
          _
        // Predicated region
        $region21: #{mlp2layers_v1.1} parent=11 // pred_check
          %p197 = pneg %p129
        $region22: #{mlp2layers_v1.1} parent=11 // pred_check_branch
          %199 = sbr.rel (%p197) target = $region24
        $region23: #{mlp2layers_v1.1} parent=11 // pred_region
          _
        $region24: #{mlp2layers_v1.1} parent=11 // pred_fallthru
          _
        // Predicated region
        $region25: #{mlp2layers_v1.1} parent=11 // pred_check
          %p200 = pneg %p150
        $region26: #{mlp2layers_v1.1} parent=11 // pred_check_branch
          %202 = sbr.rel (%p200) target = $region28
        $region27: #{mlp2layers_v1.1} parent=11 // pred_region
          _
        $region28: #{mlp2layers_v1.1} parent=11 // pred_fallthru
          _
      $region12: #{mlp2layers_v1.1} parent=5 // pred_fallthru
        _
      %p203 = scmp.lt.s32.totalorder %s14, 2
      // Predicated region
      $region29: #{mlp2layers_v1.1} parent=5 // pred_check
        %p204 = pneg %p203
      $region30: #{mlp2layers_v1.1} parent=5 // pred_check_branch
        %206 = sbr.rel (%p204) target = $region32
      $region31: #{mlp2layers_v1.1} parent=5 // pred_region
        // Predicated region
        $region33: #{mlp2layers_v1.1} parent=31 // pred_check
          %p207 = pneg %p34
        $region34: #{mlp2layers_v1.1} parent=31 // pred_check_branch
          %209 = sbr.rel (%p207) target = $region36
        $region35: #{mlp2layers_v1.1} parent=31 // pred_region
          %s210 = sand.u32 %s24, 1
          %s211 = sand.u32 %s24, 1
          %s212 = smul.addr %s211, 64
          %s213 = scalar_lea.vmem [#allocation3], %s212
          %s214 = smul.u32 2, %s14
          %s215 = smul.addr %s214, 4
          %s216 = scalar_lea.vmem %s0, %s215
          // Predicated region
          $region37: #{mlp2layers_v1.1} parent=35 // pred_check
            _
          $region38: #{mlp2layers_v1.1} parent=35 // pred_check_branch
            %218 = sbr.rel (0) target = $region40
          $region39: #{mlp2layers_v1.1} parent=35 // pred_region
            // Predicated region
            $region41: #{mlp2layers_v1.1} parent=39 // pred_check
              _
            $region42: #{mlp2layers_v1.1} parent=39 // pred_check_branch
              %220 = sbr.rel (0) target = $region44
            $region43: #{mlp2layers_v1.1} parent=39 // pred_region
              // Predicated region
              $region56: #{mlp2layers_v1.1} parent=43 // pred_check
                _
              $region57: #{mlp2layers_v1.1} parent=43 // pred_check_branch
                %249 = sbr.rel (0) target = $region59
              $region58: #{mlp2layers_v1.1} parent=43 // pred_region
                loop: start=0, step=1, limit=1
                $region60: #{mlp2layers_v1.1} parent=58 // loop_pre_header
                  _
                $region61: #{mlp2layers_v1.1} parent=58 // loop_header
                  %s251 = sphi 0, %s255
                  %p252 = scmp.ge.s32.totalorder %s251, 1
                  %s256 = sphi %s216, %s216
                  %s257 = sphi %s213, %s213
                $region62: #{mlp2layers_v1.1} parent=58 // loop_header_branch
                  %254 = sbr.rel (%p252) target = $region66
                $region63: #{mlp2layers_v1.1} parent=58 // loop_body
                  %v258 = vld [vmem:[%s256] sm:$0xff]
                  %259 = vst [vmem:[%s257] sm:$0xff] %v258
                  %v260 = vld [vmem:[%s256 + $0x10] sm:$0xff]
                  %261 = vst [vmem:[%s257 + $0x8] sm:$0xff] %v260
                  %v262 = vld [vmem:[%s256 + $0x20] sm:$0xff]
                  %263 = vst [vmem:[%s257 + $0x10] sm:$0xff] %v262
                  %v264 = vld [vmem:[%s256 + $0x30] sm:$0xff]
                  %265 = vst [vmem:[%s257 + $0x18] sm:$0xff] %v264
                  %v266 = vld [vmem:[%s256 + $0x40] sm:$0xff]
                  %267 = vst [vmem:[%s257 + $0x20] sm:$0xff] %v266
                  %v268 = vld [vmem:[%s256 + $0x50] sm:$0xff]
                  %269 = vst [vmem:[%s257 + $0x28] sm:$0xff] %v268
                  %v270 = vld [vmem:[%s256 + $0x60] sm:$0xff]
                  %271 = vst [vmem:[%s257 + $0x30] sm:$0xff] %v270
                  %v272 = vld [vmem:[%s256 + $0x70] sm:$0xff]
                  %273 = vst [vmem:[%s257 + $0x38] sm:$0xff] %v272
                $region64: #{mlp2layers_v1.1} parent=58 // loop_footer
                  %s255 = sadd.s32 1, %s251
                $region65: #{mlp2layers_v1.1} parent=58 // loop_footer_branch
                  %250 = sbr.rel target = $region61
                $region66: #{mlp2layers_v1.1} parent=58 // loop_exit
                  _
              $region59: #{mlp2layers_v1.1} parent=43 // pred_fallthru
                _
              // Predicated region
              $region67: #{mlp2layers_v1.1} parent=43 // pred_check
                _
              $region68: #{mlp2layers_v1.1} parent=43 // pred_check_branch
                %275 = sbr.rel target = $region70
              $region69: #{mlp2layers_v1.1} parent=43 // pred_region
                _
              $region70: #{mlp2layers_v1.1} parent=43 // pred_fallthru
                _
            $region44: #{mlp2layers_v1.1} parent=39 // pred_fallthru
              _
            // Predicated region
            $region45: #{mlp2layers_v1.1} parent=39 // pred_check
              _
            $region46: #{mlp2layers_v1.1} parent=39 // pred_check_branch
              %222 = sbr.rel target = $region48
            $region47: #{mlp2layers_v1.1} parent=39 // pred_region
              loop: start=0, step=1, limit=1
              $region49: #{mlp2layers_v1.1} parent=47 // loop_pre_header
                _
              $region50: #{mlp2layers_v1.1} parent=47 // loop_header
                %s225 = sphi 0, %s229
                %p226 = scmp.ge.s32.totalorder %s225, 1
                %s230 = sphi %s216, %s216
                %s231 = sphi %s213, %s213
              $region51: #{mlp2layers_v1.1} parent=47 // loop_header_branch
                %228 = sbr.rel (%p226) target = $region55
              $region52: #{mlp2layers_v1.1} parent=47 // loop_body
                %v232 = vld [vmem:[%s230] sm:$0xff]
                %233 = vst [vmem:[%s231] sm:$0xff] %v232
                %v234 = vld [vmem:[%s230 + $0x10] sm:$0xff]
                %235 = vst [vmem:[%s231 + $0x8] sm:$0xff] %v234
                %v236 = vld [vmem:[%s230 + $0x20] sm:$0xff]
                %237 = vst [vmem:[%s231 + $0x10] sm:$0xff] %v236
                %v238 = vld [vmem:[%s230 + $0x30] sm:$0xff]
                %239 = vst [vmem:[%s231 + $0x18] sm:$0xff] %v238
                %v240 = vld [vmem:[%s230 + $0x40] sm:$0xff]
                %241 = vst [vmem:[%s231 + $0x20] sm:$0xff] %v240
                %v242 = vld [vmem:[%s230 + $0x50] sm:$0xff]
                %243 = vst [vmem:[%s231 + $0x28] sm:$0xff] %v242
                %v244 = vld [vmem:[%s230 + $0x60] sm:$0xff]
                %245 = vst [vmem:[%s231 + $0x30] sm:$0xff] %v244
                %v246 = vld [vmem:[%s230 + $0x70] sm:$0xff]
                %247 = vst [vmem:[%s231 + $0x38] sm:$0xff] %v246
              $region53: #{mlp2layers_v1.1} parent=47 // loop_footer
                %s229 = sadd.s32 1, %s225
              $region54: #{mlp2layers_v1.1} parent=47 // loop_footer_branch
                %224 = sbr.rel target = $region50
              $region55: #{mlp2layers_v1.1} parent=47 // loop_exit
                _
            $region48: #{mlp2layers_v1.1} parent=39 // pred_fallthru
              _
          $region40: #{mlp2layers_v1.1} parent=35 // pred_fallthru
            _
          %276 = vnop
        $region36: #{mlp2layers_v1.1} parent=31 // pred_fallthru
          _
        // Predicated region
        $region71: #{mlp2layers_v1.1} parent=31 // pred_check
          %p277 = pneg %p60
        $region72: #{mlp2layers_v1.1} parent=31 // pred_check_branch
          %279 = sbr.rel (%p277) target = $region74
        $region73: #{mlp2layers_v1.1} parent=31 // pred_region
          %s280 = sand.u32 %s50, 1
          %s281 = sand.u32 %s50, 1
          %s282 = smul.addr %s281, 64
          %s283 = scalar_lea.vmem [#allocation4], %s282
          %s284 = smul.u32 2, %s14
          %s285 = smul.addr %s284, 4
          %s286 = scalar_lea.vmem %s1, %s285
          // Predicated region
          $region75: #{mlp2layers_v1.1} parent=73 // pred_check
            _
          $region76: #{mlp2layers_v1.1} parent=73 // pred_check_branch
            %288 = sbr.rel (0) target = $region78
          $region77: #{mlp2layers_v1.1} parent=73 // pred_region
            // Predicated region
            $region79: #{mlp2layers_v1.1} parent=77 // pred_check
              _
            $region80: #{mlp2layers_v1.1} parent=77 // pred_check_branch
              %290 = sbr.rel (0) target = $region82
            $region81: #{mlp2layers_v1.1} parent=77 // pred_region
              // Predicated region
              $region94: #{mlp2layers_v1.1} parent=81 // pred_check
                _
              $region95: #{mlp2layers_v1.1} parent=81 // pred_check_branch
                %319 = sbr.rel (0) target = $region97
              $region96: #{mlp2layers_v1.1} parent=81 // pred_region
                loop: start=0, step=1, limit=1
                $region98: #{mlp2layers_v1.1} parent=96 // loop_pre_header
                  _
                $region99: #{mlp2layers_v1.1} parent=96 // loop_header
                  %s321 = sphi 0, %s325
                  %p322 = scmp.ge.s32.totalorder %s321, 1
                  %s326 = sphi %s286, %s286
                  %s327 = sphi %s283, %s283
                $region100: #{mlp2layers_v1.1} parent=96 // loop_header_branch
                  %324 = sbr.rel (%p322) target = $region104
                $region101: #{mlp2layers_v1.1} parent=96 // loop_body
                  %v328 = vld [vmem:[%s326] sm:$0xff]
                  %329 = vst [vmem:[%s327] sm:$0xff] %v328
                  %v330 = vld [vmem:[%s326 + $0x10] sm:$0xff]
                  %331 = vst [vmem:[%s327 + $0x8] sm:$0xff] %v330
                  %v332 = vld [vmem:[%s326 + $0x20] sm:$0xff]
                  %333 = vst [vmem:[%s327 + $0x10] sm:$0xff] %v332
                  %v334 = vld [vmem:[%s326 + $0x30] sm:$0xff]
                  %335 = vst [vmem:[%s327 + $0x18] sm:$0xff] %v334
                  %v336 = vld [vmem:[%s326 + $0x40] sm:$0xff]
                  %337 = vst [vmem:[%s327 + $0x20] sm:$0xff] %v336
                  %v338 = vld [vmem:[%s326 + $0x50] sm:$0xff]
                  %339 = vst [vmem:[%s327 + $0x28] sm:$0xff] %v338
                  %v340 = vld [vmem:[%s326 + $0x60] sm:$0xff]
                  %341 = vst [vmem:[%s327 + $0x30] sm:$0xff] %v340
                  %v342 = vld [vmem:[%s326 + $0x70] sm:$0xff]
                  %343 = vst [vmem:[%s327 + $0x38] sm:$0xff] %v342
                $region102: #{mlp2layers_v1.1} parent=96 // loop_footer
                  %s325 = sadd.s32 1, %s321
                $region103: #{mlp2layers_v1.1} parent=96 // loop_footer_branch
                  %320 = sbr.rel target = $region99
                $region104: #{mlp2layers_v1.1} parent=96 // loop_exit
                  _
              $region97: #{mlp2layers_v1.1} parent=81 // pred_fallthru
                _
              // Predicated region
              $region105: #{mlp2layers_v1.1} parent=81 // pred_check
                _
              $region106: #{mlp2layers_v1.1} parent=81 // pred_check_branch
                %345 = sbr.rel target = $region108
              $region107: #{mlp2layers_v1.1} parent=81 // pred_region
                _
              $region108: #{mlp2layers_v1.1} parent=81 // pred_fallthru
                _
            $region82: #{mlp2layers_v1.1} parent=77 // pred_fallthru
              _
            // Predicated region
            $region83: #{mlp2layers_v1.1} parent=77 // pred_check
              _
            $region84: #{mlp2layers_v1.1} parent=77 // pred_check_branch
              %292 = sbr.rel target = $region86
            $region85: #{mlp2layers_v1.1} parent=77 // pred_region
              loop: start=0, step=1, limit=1
              $region87: #{mlp2layers_v1.1} parent=85 // loop_pre_header
                _
              $region88: #{mlp2layers_v1.1} parent=85 // loop_header
                %s295 = sphi 0, %s299
                %p296 = scmp.ge.s32.totalorder %s295, 1
                %s300 = sphi %s286, %s286
                %s301 = sphi %s283, %s283
              $region89: #{mlp2layers_v1.1} parent=85 // loop_header_branch
                %298 = sbr.rel (%p296) target = $region93
              $region90: #{mlp2layers_v1.1} parent=85 // loop_body
                %v302 = vld [vmem:[%s300] sm:$0xff]
                %303 = vst [vmem:[%s301] sm:$0xff] %v302
                %v304 = vld [vmem:[%s300 + $0x10] sm:$0xff]
                %305 = vst [vmem:[%s301 + $0x8] sm:$0xff] %v304
                %v306 = vld [vmem:[%s300 + $0x20] sm:$0xff]
                %307 = vst [vmem:[%s301 + $0x10] sm:$0xff] %v306
                %v308 = vld [vmem:[%s300 + $0x30] sm:$0xff]
                %309 = vst [vmem:[%s301 + $0x18] sm:$0xff] %v308
                %v310 = vld [vmem:[%s300 + $0x40] sm:$0xff]
                %311 = vst [vmem:[%s301 + $0x20] sm:$0xff] %v310
                %v312 = vld [vmem:[%s300 + $0x50] sm:$0xff]
                %313 = vst [vmem:[%s301 + $0x28] sm:$0xff] %v312
                %v314 = vld [vmem:[%s300 + $0x60] sm:$0xff]
                %315 = vst [vmem:[%s301 + $0x30] sm:$0xff] %v314
                %v316 = vld [vmem:[%s300 + $0x70] sm:$0xff]
                %317 = vst [vmem:[%s301 + $0x38] sm:$0xff] %v316
              $region91: #{mlp2layers_v1.1} parent=85 // loop_footer
                %s299 = sadd.s32 1, %s295
              $region92: #{mlp2layers_v1.1} parent=85 // loop_footer_branch
                %294 = sbr.rel target = $region88
              $region93: #{mlp2layers_v1.1} parent=85 // loop_exit
                _
            $region86: #{mlp2layers_v1.1} parent=77 // pred_fallthru
              _
          $region78: #{mlp2layers_v1.1} parent=73 // pred_fallthru
            _
          %346 = vnop
        $region74: #{mlp2layers_v1.1} parent=31 // pred_fallthru
          _
      $region32: #{mlp2layers_v1.1} parent=5 // pred_fallthru
        _
      %p347 = scmp.le.s32.totalorder 1, %s14
      %p348 = scmp.lt.s32.totalorder %s14, 3
      %p349 = pnand %p347, %p348
      %p350 = pneg %p349
      // Predicated region
      $region109: #{mlp2layers_v1.1} parent=5 // pred_check
        _
      $region110: #{mlp2layers_v1.1} parent=5 // pred_check_branch
        %352 = sbr.rel (%p349) target = $region112
      $region111: #{mlp2layers_v1.1} parent=5 // pred_region
        %s353 = ssub.s32 %s14, 1
        %s354 = sand.u32 %s27, 1
        %s355 = sand.u32 %s27, 1
        %s356 = smul.addr %s355, 64
        %s357 = scalar_lea.vmem [#allocation3], %s356
        // Predicated region
        $region113: #{mlp2layers_v1.1} parent=111 // pred_check
          %p358 = pneg %p40
        $region114: #{mlp2layers_v1.1} parent=111 // pred_check_branch
          %360 = sbr.rel (%p358) target = $region116
        $region115: #{mlp2layers_v1.1} parent=111 // pred_region
          _
        $region116: #{mlp2layers_v1.1} parent=111 // pred_fallthru
          _
        %s361 = sand.u32 %s53, 1
        %s362 = sand.u32 %s53, 1
        %s363 = smul.addr %s362, 64
        %s364 = scalar_lea.vmem [#allocation4], %s363
        // Predicated region
        $region117: #{mlp2layers_v1.1} parent=111 // pred_check
          %p365 = pneg %p66
        $region118: #{mlp2layers_v1.1} parent=111 // pred_check_branch
          %367 = sbr.rel (%p365) target = $region120
        $region119: #{mlp2layers_v1.1} parent=111 // pred_region
          _
        $region120: #{mlp2layers_v1.1} parent=111 // pred_fallthru
          _
        %s368 = sand.u32 %s27, 1
        %s369 = sand.u32 %s27, 1
        %s370 = smul.addr %s369, 64
        %s371 = scalar_lea.vmem [#allocation3], %s370
        %p372 = pneg %p40
        %p373 = pneg %p37
        %s374 = sand.u32 %s53, 1
        %s375 = sand.u32 %s53, 1
        %s376 = smul.addr %s375, 64
        %s377 = scalar_lea.vmem [#allocation4], %s376
        %p378 = pneg %p66
        %p379 = pneg %p63
        %p380 = pneg %p87
        %p381 = pneg %p84
        %p382 = pneg %p108
        %p383 = pneg %p105
        %p384 = pneg %p129
        %p385 = pneg %p126
        %p386 = pneg %p150
        %p387 = pneg %p147
        %p388 = pneg %p176
        %p389 = pneg %p173
        %s390 = smul.u32 2, %s19
        %p391 = scmp.lt.s32.totalorder %s390, 3
        %s392 = scalar_select %p391, %s390, 3
        %s393 = scalar_lea.vmem %s6, %s392
        %s394 = smul.u32 2, %s19
        %s395 = smul.u32 2, %s19
        %s396 = smul.u32 2, %s19
        %p397 = scmp.lt.s32.totalorder %s396, 3
        %s398 = scalar_select %p397, %s396, 3
        %s399 = scalar_lea.vmem %s6, %s398
        %s400 = smul.u32 2, %s19
        %v402 = vld [vmem:[%s357] sm:$0xff]
        %v403 = vld [vmem:[%s357 + $0x8] sm:$0xff]
        %v404 = vld [vmem:[%s357 + $0x10] sm:$0xff]
        %v405 = vld [vmem:[%s357 + $0x18] sm:$0xff]
        %v406 = vld [vmem:[%s357 + $0x20] sm:$0xff]
        %v407 = vld [vmem:[%s357 + $0x28] sm:$0xff]
        %v408 = vld [vmem:[%s357 + $0x30] sm:$0xff]
        %v409 = vld [vmem:[%s357 + $0x38] sm:$0xff]
        %v410 = vld [vmem:[%s364] sm:$0xff]
        %v411 = vld [vmem:[%s364 + $0x8] sm:$0xff]
        %v412 = vld [vmem:[%s364 + $0x10] sm:$0xff]
        %v413 = vld [vmem:[%s364 + $0x18] sm:$0xff]
        %v414 = vld [vmem:[%s364 + $0x20] sm:$0xff]
        %v415 = vld [vmem:[%s364 + $0x28] sm:$0xff]
        %v416 = vld [vmem:[%s364 + $0x30] sm:$0xff]
        %v417 = vld [vmem:[%s364 + $0x38] sm:$0xff]
        %v418 = vmul.bf16 %v402, %v410
        %v419 = vmul.bf16 %v403, %v411
        %v420 = vmul.bf16 %v404, %v412
        %v421 = vmul.bf16 %v405, %v413
        %v422 = vmul.bf16 %v406, %v414
        %v423 = vmul.bf16 %v407, %v415
        %v424 = vmul.bf16 %v408, %v416
        %v425 = vmul.bf16 %v409, %v417
        %v426 = vld [vmem:[%s2] sm:$0xf]
        %v427 = vld [vmem:[%s2 + $0x4] sm:$0xf]
        %v428 = vld [vmem:[%s2 + $0x8] sm:$0xf]
        %v429 = vld [vmem:[%s2 + $0xc] sm:$0xf]
        %v430 = vld [vmem:[%s2 + $0x10] sm:$0xf]
        %v431 = vld [vmem:[%s2 + $0x14] sm:$0xf]
        %v432 = vld [vmem:[%s2 + $0x18] sm:$0xf]
        %v433 = vld [vmem:[%s2 + $0x1c] sm:$0xf]
        %v434 = vld [vmem:[%s2 + $0x20] sm:$0xf]
        %v435 = vld [vmem:[%s2 + $0x24] sm:$0xf]
        %v436 = vld [vmem:[%s2 + $0x28] sm:$0xf]
        %v437 = vld [vmem:[%s2 + $0x2c] sm:$0xf]
        %v438 = vld [vmem:[%s2 + $0x30] sm:$0xf]
        %v439 = vld [vmem:[%s2 + $0x34] sm:$0xf]
        %v440 = vld [vmem:[%s2 + $0x38] sm:$0xf]
        %v441 = vld [vmem:[%s2 + $0x3c] sm:$0xf]
        %v442 = vld [vmem:[%s2 + $0x40] sm:$0xf]
        %v443 = vld [vmem:[%s2 + $0x44] sm:$0xf]
        %v444 = vld [vmem:[%s2 + $0x48] sm:$0xf]
        %v445 = vld [vmem:[%s2 + $0x4c] sm:$0xf]
        %v446 = vld [vmem:[%s2 + $0x50] sm:$0xf]
        %v447 = vld [vmem:[%s2 + $0x54] sm:$0xf]
        %v448 = vld [vmem:[%s2 + $0x58] sm:$0xf]
        %v449 = vld [vmem:[%s2 + $0x5c] sm:$0xf]
        %v450 = vld [vmem:[%s2 + $0x60] sm:$0xf]
        %v451 = vld [vmem:[%s2 + $0x64] sm:$0xf]
        %v452 = vld [vmem:[%s2 + $0x68] sm:$0xf]
        %v453 = vld [vmem:[%s2 + $0x6c] sm:$0xf]
        %v454 = vld [vmem:[%s2 + $0x70] sm:$0xf]
        %v455 = vld [vmem:[%s2 + $0x74] sm:$0xf]
        %v456 = vld [vmem:[%s2 + $0x78] sm:$0xf]
        %v457 = vld [vmem:[%s2 + $0x7c] sm:$0xf]
        %v458 = vld [vmem:[%s3] sm:$0xff]
        %v459 = vld [vmem:[%s3 + $0x8] sm:$0xff]
        %v460 = vld [vmem:[%s3 + $0x10] sm:$0xff]
        %v461 = vld [vmem:[%s3 + $0x18] sm:$0xff]
        %v462 = vld [vmem:[%s3 + $0x20] sm:$0xff]
        %v463 = vld [vmem:[%s3 + $0x28] sm:$0xff]
        %v464 = vld [vmem:[%s3 + $0x30] sm:$0xff]
        %v465 = vld [vmem:[%s3 + $0x38] sm:$0xff]
        %v466 = vld [vmem:[%s3 + $0x40] sm:$0xff]
        %v467 = vld [vmem:[%s3 + $0x48] sm:$0xff]
        %v468 = vld [vmem:[%s3 + $0x50] sm:$0xff]
        %v469 = vld [vmem:[%s3 + $0x58] sm:$0xff]
        %v470 = vld [vmem:[%s3 + $0x60] sm:$0xff]
        %v471 = vld [vmem:[%s3 + $0x68] sm:$0xff]
        %v472 = vld [vmem:[%s3 + $0x70] sm:$0xff]
        %v473 = vld [vmem:[%s3 + $0x78] sm:$0xff]
        %v474 = vld [vmem:[%s3 + $0x80] sm:$0xff]
        %v475 = vld [vmem:[%s3 + $0x88] sm:$0xff]
        %v476 = vld [vmem:[%s3 + $0x90] sm:$0xff]
        %v477 = vld [vmem:[%s3 + $0x98] sm:$0xff]
        %v478 = vld [vmem:[%s3 + $0xa0] sm:$0xff]
        %v479 = vld [vmem:[%s3 + $0xa8] sm:$0xff]
        %v480 = vld [vmem:[%s3 + $0xb0] sm:$0xff]
        %v481 = vld [vmem:[%s3 + $0xb8] sm:$0xff]
        %v482 = vld [vmem:[%s3 + $0xc0] sm:$0xff]
        %v483 = vld [vmem:[%s3 + $0xc8] sm:$0xff]
        %v484 = vld [vmem:[%s3 + $0xd0] sm:$0xff]
        %v485 = vld [vmem:[%s3 + $0xd8] sm:$0xff]
        %v486 = vld [vmem:[%s3 + $0xe0] sm:$0xff]
        %v487 = vld [vmem:[%s3 + $0xe8] sm:$0xff]
        %v488 = vld [vmem:[%s3 + $0xf0] sm:$0xff]
        %v489 = vld [vmem:[%s3 + $0xf8] sm:$0xff]
        %491 = vset.pattern.permute.xlu0 0
        %492 = vperm.xlu0 %491, %v458
        %v493 = vpop.permute.xlu0 %492
        %496 = vset.pattern.permute.xlu0 0
        %497 = vperm.xlu0 %496, %v459
        %v498 = vpop.permute.xlu0 %497
        %501 = vset.pattern.permute.xlu0 0
        %502 = vperm.xlu0 %501, %v460
        %v503 = vpop.permute.xlu0 %502
        %506 = vset.pattern.permute.xlu0 0
        %507 = vperm.xlu0 %506, %v461
        %v508 = vpop.permute.xlu0 %507
        %511 = vset.pattern.permute.xlu0 0
        %512 = vperm.xlu0 %511, %v462
        %v513 = vpop.permute.xlu0 %512
        %516 = vset.pattern.permute.xlu0 0
        %517 = vperm.xlu0 %516, %v463
        %v518 = vpop.permute.xlu0 %517
        %521 = vset.pattern.permute.xlu0 0
        %522 = vperm.xlu0 %521, %v464
        %v523 = vpop.permute.xlu0 %522
        %526 = vset.pattern.permute.xlu0 0
        %527 = vperm.xlu0 %526, %v465
        %v528 = vpop.permute.xlu0 %527
        %531 = vset.pattern.permute.xlu0 0
        %532 = vperm.xlu0 %531, %v466
        %v533 = vpop.permute.xlu0 %532
        %536 = vset.pattern.permute.xlu0 0
        %537 = vperm.xlu0 %536, %v467
        %v538 = vpop.permute.xlu0 %537
        %541 = vset.pattern.permute.xlu0 0
        %542 = vperm.xlu0 %541, %v468
        %v543 = vpop.permute.xlu0 %542
        %546 = vset.pattern.permute.xlu0 0
        %547 = vperm.xlu0 %546, %v469
        %v548 = vpop.permute.xlu0 %547
        %551 = vset.pattern.permute.xlu0 0
        %552 = vperm.xlu0 %551, %v470
        %v553 = vpop.permute.xlu0 %552
        %556 = vset.pattern.permute.xlu0 0
        %557 = vperm.xlu0 %556, %v471
        %v558 = vpop.permute.xlu0 %557
        %561 = vset.pattern.permute.xlu0 0
        %562 = vperm.xlu0 %561, %v472
        %v563 = vpop.permute.xlu0 %562
        %566 = vset.pattern.permute.xlu0 0
        %567 = vperm.xlu0 %566, %v473
        %v568 = vpop.permute.xlu0 %567
        %571 = vset.pattern.permute.xlu0 0
        %572 = vperm.xlu0 %571, %v474
        %v573 = vpop.permute.xlu0 %572
        %576 = vset.pattern.permute.xlu0 0
        %577 = vperm.xlu0 %576, %v475
        %v578 = vpop.permute.xlu0 %577
        %581 = vset.pattern.permute.xlu0 0
        %582 = vperm.xlu0 %581, %v476
        %v583 = vpop.permute.xlu0 %582
        %586 = vset.pattern.permute.xlu0 0
        %587 = vperm.xlu0 %586, %v477
        %v588 = vpop.permute.xlu0 %587
        %591 = vset.pattern.permute.xlu0 0
        %592 = vperm.xlu0 %591, %v478
        %v593 = vpop.permute.xlu0 %592
        %596 = vset.pattern.permute.xlu0 0
        %597 = vperm.xlu0 %596, %v479
        %v598 = vpop.permute.xlu0 %597
        %601 = vset.pattern.permute.xlu0 0
        %602 = vperm.xlu0 %601, %v480
        %v603 = vpop.permute.xlu0 %602
        %606 = vset.pattern.permute.xlu0 0
        %607 = vperm.xlu0 %606, %v481
        %v608 = vpop.permute.xlu0 %607
        %611 = vset.pattern.permute.xlu0 0
        %612 = vperm.xlu0 %611, %v482
        %v613 = vpop.permute.xlu0 %612
        %616 = vset.pattern.permute.xlu0 0
        %617 = vperm.xlu0 %616, %v483
        %v618 = vpop.permute.xlu0 %617
        %621 = vset.pattern.permute.xlu0 0
        %622 = vperm.xlu0 %621, %v484
        %v623 = vpop.permute.xlu0 %622
        %626 = vset.pattern.permute.xlu0 0
        %627 = vperm.xlu0 %626, %v485
        %v628 = vpop.permute.xlu0 %627
        %631 = vset.pattern.permute.xlu0 0
        %632 = vperm.xlu0 %631, %v486
        %v633 = vpop.permute.xlu0 %632
        %636 = vset.pattern.permute.xlu0 0
        %637 = vperm.xlu0 %636, %v487
        %v638 = vpop.permute.xlu0 %637
        %641 = vset.pattern.permute.xlu0 0
        %642 = vperm.xlu0 %641, %v488
        %v643 = vpop.permute.xlu0 %642
        %646 = vset.pattern.permute.xlu0 0
        %647 = vperm.xlu0 %646, %v489
        %v648 = vpop.permute.xlu0 %647
        %v682 = vunpack.c.l.b16 %v426
        %v683 = vunpack.c.l.b16 %v427
        %v684 = vunpack.c.l.b16 %v428
        %v685 = vunpack.c.l.b16 %v429
        %v686 = vunpack.c.l.b16 %v430
        %v687 = vunpack.c.l.b16 %v431
        %v688 = vunpack.c.l.b16 %v432
        %v689 = vunpack.c.l.b16 %v433
        %v690 = vunpack.c.l.b16 %v434
        %v691 = vunpack.c.l.b16 %v435
        %v692 = vunpack.c.l.b16 %v436
        %v693 = vunpack.c.l.b16 %v437
        %v694 = vunpack.c.l.b16 %v438
        %v695 = vunpack.c.l.b16 %v439
        %v696 = vunpack.c.l.b16 %v440
        %v697 = vunpack.c.l.b16 %v441
        %v698 = vunpack.c.l.b16 %v442
        %v699 = vunpack.c.l.b16 %v443
        %v700 = vunpack.c.l.b16 %v444
        %v701 = vunpack.c.l.b16 %v445
        %v702 = vunpack.c.l.b16 %v446
        %v703 = vunpack.c.l.b16 %v447
        %v704 = vunpack.c.l.b16 %v448
        %v705 = vunpack.c.l.b16 %v449
        %v706 = vunpack.c.l.b16 %v450
        %v707 = vunpack.c.l.b16 %v451
        %v708 = vunpack.c.l.b16 %v452
        %v709 = vunpack.c.l.b16 %v453
        %v710 = vunpack.c.l.b16 %v454
        %v711 = vunpack.c.l.b16 %v455
        %v712 = vunpack.c.l.b16 %v456
        %v713 = vunpack.c.l.b16 %v457
        %v714 = vpack.c.b16 %v683, %v682
        %v715 = vpack.c.b16 %v685, %v684
        %v716 = vpack.c.b16 %v687, %v686
        %v717 = vpack.c.b16 %v689, %v688
        %v718 = vpack.c.b16 %v691, %v690
        %v719 = vpack.c.b16 %v693, %v692
        %v720 = vpack.c.b16 %v695, %v694
        %v721 = vpack.c.b16 %v697, %v696
        %v722 = vpack.c.b16 %v699, %v698
        %v723 = vpack.c.b16 %v701, %v700
        %v724 = vpack.c.b16 %v703, %v702
        %v725 = vpack.c.b16 %v705, %v704
        %v726 = vpack.c.b16 %v707, %v706
        %v727 = vpack.c.b16 %v709, %v708
        %v728 = vpack.c.b16 %v711, %v710
        %v729 = vpack.c.b16 %v713, %v712
        %v738 = vunpack.c.l.b16 %v418
        %v739 = vunpack.c.h.b16 %v418
        %v740 = vunpack.c.l.b16 %v419
        %v741 = vunpack.c.h.b16 %v419
        %v742 = vunpack.c.l.b16 %v420
        %v743 = vunpack.c.h.b16 %v420
        %v744 = vunpack.c.l.b16 %v421
        %v745 = vunpack.c.h.b16 %v421
        %v746 = vunpack.c.l.b16 %v422
        %v747 = vunpack.c.h.b16 %v422
        %v748 = vunpack.c.l.b16 %v423
        %v749 = vunpack.c.h.b16 %v423
        %v750 = vunpack.c.l.b16 %v424
        %v751 = vunpack.c.h.b16 %v424
        %v752 = vunpack.c.l.b16 %v425
        %v753 = vunpack.c.h.b16 %v425
        %v754 = vpack.c.b16 %v740, %v738
        %v755 = vpack.c.b16 %v741, %v739
        %v756 = vpack.c.b16 %v744, %v742
        %v757 = vpack.c.b16 %v745, %v743
        %v758 = vpack.c.b16 %v748, %v746
        %v759 = vpack.c.b16 %v749, %v747
        %v760 = vpack.c.b16 %v752, %v750
        %v761 = vpack.c.b16 %v753, %v751
        %vm770 = vcmask 523264
        %v772 = vsel %vm770, %v714, 0
        %v775 = vsel %vm770, %v715, 0
        %v778 = vsel %vm770, %v716, 0
        %v781 = vsel %vm770, %v717, 0
        %v784 = vsel %vm770, %v718, 0
        %v787 = vsel %vm770, %v719, 0
        %v790 = vsel %vm770, %v720, 0
        %v793 = vsel %vm770, %v721, 0
        %v796 = vsel %vm770, %v722, 0
        %v799 = vsel %vm770, %v723, 0
        %v802 = vsel %vm770, %v724, 0
        %v805 = vsel %vm770, %v725, 0
        %v808 = vsel %vm770, %v726, 0
        %v811 = vsel %vm770, %v727, 0
        %v814 = vsel %vm770, %v728, 0
        %v817 = vsel %vm770, %v729, 0
        %819 = vmatprep.subr.bf16.mxu0 %v755
        %820 = vmatpush1.bf16.msra.mxu0 %v754
        %821 = vmatprep.subr.bf16.mxu0 %v757
        %822 = vmatpush1.bf16.msra.mxu0 %v756
        %823 = vmatprep.subr.bf16.mxu0 %v759
        %824 = vmatpush1.bf16.msra.mxu0 %v758
        %825 = vmatprep.subr.bf16.mxu0 %v761
        %826 = vmatpush1.bf16.msra.mxu0 %v760
        %827 = vmatprep.subr.bf16.mxu0 0
        %828 = vmatpush1.bf16.msra.mxu0 0
        %829 = vmatprep.subr.bf16.mxu0 0
        %830 = vmatpush1.bf16.msra.mxu0 0
        %831 = vmatprep.subr.bf16.mxu0 0
        %832 = vmatpush1.bf16.msra.mxu0 0
        %833 = vmatprep.subr.bf16.mxu0 0
        %834 = vmatpush1.bf16.msra.mxu0 0
        %835 = vmatprep.subr.bf16.mxu0 0
        %836 = vmatpush1.bf16.msra.mxu0 0
        %837 = vmatprep.subr.bf16.mxu0 0
        %838 = vmatpush1.bf16.msra.mxu0 0
        %839 = vmatprep.subr.bf16.mxu0 0
        %840 = vmatpush1.bf16.msra.mxu0 0
        %841 = vmatprep.subr.bf16.mxu0 0
        %842 = vmatpush1.bf16.msra.mxu0 0
        %843 = vmatprep.subr.bf16.mxu0 0
        %844 = vmatpush1.bf16.msra.mxu0 0
        %845 = vmatprep.subr.bf16.mxu0 0
        %846 = vmatpush1.bf16.msra.mxu0 0
        %847 = vmatprep.subr.bf16.mxu0 0
        %848 = vmatpush1.bf16.msra.mxu0 0
        %849 = vmatprep.subr.bf16.mxu0 0
        %850 = vmatpush1.bf16.msra.mxu0 0
        %851 = vmatprep.mubr.bf16.mxu0 0
        %852 = vmatmul.mubr.bf16.gmra.mrb[0].mxu0 %v772
        %v853 = vpop.f32.mrb[0].mxu0
        %v854 = vadd.f32 %v493, %v853
        %v855 = vpop.f32.mrb[0].mxu0
        %v856 = vadd.f32 %v493, %v855
        %v857 = vpop.f32.mrb[0].mxu0
        %v858 = vadd.f32 %v498, %v857
        %v859 = vpop.f32.mrb[0].mxu0
        %v860 = vadd.f32 %v498, %v859
        %861 = vmatprep.mubr.bf16.mxu0 0
        %862 = vmatmul.mubr.bf16.gmra.mrb[0].mxu0 %v775
        %v863 = vpop.f32.mrb[0].mxu0
        %v864 = vadd.f32 %v503, %v863
        %v865 = vpop.f32.mrb[0].mxu0
        %v866 = vadd.f32 %v503, %v865
        %v867 = vpop.f32.mrb[0].mxu0
        %v868 = vadd.f32 %v508, %v867
        %v869 = vpop.f32.mrb[0].mxu0
        %v870 = vadd.f32 %v508, %v869
        %871 = vmatprep.mubr.bf16.mxu0 0
        %872 = vmatmul.mubr.bf16.gmra.mrb[0].mxu0 %v778
        %v873 = vpop.f32.mrb[0].mxu0
        %v874 = vadd.f32 %v513, %v873
        %v875 = vpop.f32.mrb[0].mxu0
        %v876 = vadd.f32 %v513, %v875
        %v877 = vpop.f32.mrb[0].mxu0
        %v878 = vadd.f32 %v518, %v877
        %v879 = vpop.f32.mrb[0].mxu0
        %v880 = vadd.f32 %v518, %v879
        %881 = vmatprep.mubr.bf16.mxu0 0
        %882 = vmatmul.mubr.bf16.gmra.mrb[0].mxu0 %v781
        %v883 = vpop.f32.mrb[0].mxu0
        %v884 = vadd.f32 %v523, %v883
        %v885 = vpop.f32.mrb[0].mxu0
        %v886 = vadd.f32 %v523, %v885
        %v887 = vpop.f32.mrb[0].mxu0
        %v888 = vadd.f32 %v528, %v887
        %v889 = vpop.f32.mrb[0].mxu0
        %v890 = vadd.f32 %v528, %v889
        %891 = vmatprep.mubr.bf16.mxu0 0
        %892 = vmatmul.mubr.bf16.gmra.mrb[0].mxu0 %v784
        %v893 = vpop.f32.mrb[0].mxu0
        %v894 = vadd.f32 %v533, %v893
        %v895 = vpop.f32.mrb[0].mxu0
        %v896 = vadd.f32 %v533, %v895
        %v897 = vpop.f32.mrb[0].mxu0
        %v898 = vadd.f32 %v538, %v897
        %v899 = vpop.f32.mrb[0].mxu0
        %v900 = vadd.f32 %v538, %v899
        %901 = vmatprep.mubr.bf16.mxu0 0
        %902 = vmatmul.mubr.bf16.gmra.mrb[0].mxu0 %v787
        %v903 = vpop.f32.mrb[0].mxu0
        %v904 = vadd.f32 %v543, %v903
        %v905 = vpop.f32.mrb[0].mxu0
        %v906 = vadd.f32 %v543, %v905
        %v907 = vpop.f32.mrb[0].mxu0
        %v908 = vadd.f32 %v548, %v907
        %v909 = vpop.f32.mrb[0].mxu0
        %v910 = vadd.f32 %v548, %v909
        %911 = vmatprep.mubr.bf16.mxu0 0
        %912 = vmatmul.mubr.bf16.gmra.mrb[0].mxu0 %v790
        %v913 = vpop.f32.mrb[0].mxu0
        %v914 = vadd.f32 %v553, %v913
        %v915 = vpop.f32.mrb[0].mxu0
        %v916 = vadd.f32 %v553, %v915
        %v917 = vpop.f32.mrb[0].mxu0
        %v918 = vadd.f32 %v558, %v917
        %v919 = vpop.f32.mrb[0].mxu0
        %v920 = vadd.f32 %v558, %v919
        %921 = vmatprep.mubr.bf16.mxu0 0
        %922 = vmatmul.mubr.bf16.gmra.mrb[0].mxu0 %v793
        %v923 = vpop.f32.mrb[0].mxu0
        %v924 = vadd.f32 %v563, %v923
        %v925 = vpop.f32.mrb[0].mxu0
        %v926 = vadd.f32 %v563, %v925
        %v927 = vpop.f32.mrb[0].mxu0
        %v928 = vadd.f32 %v568, %v927
        %v929 = vpop.f32.mrb[0].mxu0
        %v930 = vadd.f32 %v568, %v929
        %931 = vmatprep.mubr.bf16.mxu0 0
        %932 = vmatmul.mubr.bf16.gmra.mrb[0].mxu0 %v796
        %v933 = vpop.f32.mrb[0].mxu0
        %v934 = vadd.f32 %v573, %v933
        %v935 = vpop.f32.mrb[0].mxu0
        %v936 = vadd.f32 %v573, %v935
        %v937 = vpop.f32.mrb[0].mxu0
        %v938 = vadd.f32 %v578, %v937
        %v939 = vpop.f32.mrb[0].mxu0
        %v940 = vadd.f32 %v578, %v939
        %941 = vmatprep.mubr.bf16.mxu0 0
        %942 = vmatmul.mubr.bf16.gmra.mrb[0].mxu0 %v799
        %v943 = vpop.f32.mrb[0].mxu0
        %v944 = vadd.f32 %v583, %v943
        %v945 = vpop.f32.mrb[0].mxu0
        %v946 = vadd.f32 %v583, %v945
        %v947 = vpop.f32.mrb[0].mxu0
        %v948 = vadd.f32 %v588, %v947
        %v949 = vpop.f32.mrb[0].mxu0
        %v950 = vadd.f32 %v588, %v949
        %951 = vmatprep.mubr.bf16.mxu0 0
        %952 = vmatmul.mubr.bf16.gmra.mrb[0].mxu0 %v802
        %v953 = vpop.f32.mrb[0].mxu0
        %v954 = vadd.f32 %v593, %v953
        %v955 = vpop.f32.mrb[0].mxu0
        %v956 = vadd.f32 %v593, %v955
        %v957 = vpop.f32.mrb[0].mxu0
        %v958 = vadd.f32 %v598, %v957
        %v959 = vpop.f32.mrb[0].mxu0
        %v960 = vadd.f32 %v598, %v959
        %961 = vmatprep.mubr.bf16.mxu0 0
        %962 = vmatmul.mubr.bf16.gmra.mrb[0].mxu0 %v805
        %v963 = vpop.f32.mrb[0].mxu0
        %v964 = vadd.f32 %v603, %v963
        %v965 = vpop.f32.mrb[0].mxu0
        %v966 = vadd.f32 %v603, %v965
        %v967 = vpop.f32.mrb[0].mxu0
        %v968 = vadd.f32 %v608, %v967
        %v969 = vpop.f32.mrb[0].mxu0
        %v970 = vadd.f32 %v608, %v969
        %971 = vmatprep.mubr.bf16.mxu0 0
        %972 = vmatmul.mubr.bf16.gmra.mrb[0].mxu0 %v808
        %v973 = vpop.f32.mrb[0].mxu0
        %v974 = vadd.f32 %v613, %v973
        %v975 = vpop.f32.mrb[0].mxu0
        %v976 = vadd.f32 %v613, %v975
        %v977 = vpop.f32.mrb[0].mxu0
        %v978 = vadd.f32 %v618, %v977
        %v979 = vpop.f32.mrb[0].mxu0
        %v980 = vadd.f32 %v618, %v979
        %981 = vmatprep.mubr.bf16.mxu0 0
        %982 = vmatmul.mubr.bf16.gmra.mrb[0].mxu0 %v811
        %v983 = vpop.f32.mrb[0].mxu0
        %v984 = vadd.f32 %v623, %v983
        %v985 = vpop.f32.mrb[0].mxu0
        %v986 = vadd.f32 %v623, %v985
        %v987 = vpop.f32.mrb[0].mxu0
        %v988 = vadd.f32 %v628, %v987
        %v989 = vpop.f32.mrb[0].mxu0
        %v990 = vadd.f32 %v628, %v989
        %991 = vmatprep.mubr.bf16.mxu0 0
        %992 = vmatmul.mubr.bf16.gmra.mrb[0].mxu0 %v814
        %v993 = vpop.f32.mrb[0].mxu0
        %v994 = vadd.f32 %v633, %v993
        %v995 = vpop.f32.mrb[0].mxu0
        %v996 = vadd.f32 %v633, %v995
        %v997 = vpop.f32.mrb[0].mxu0
        %v998 = vadd.f32 %v638, %v997
        %v999 = vpop.f32.mrb[0].mxu0
        %v1000 = vadd.f32 %v638, %v999
        %1001 = vmatprep.mubr.bf16.mxu0 0
        %1002 = vmatmul.mubr.bf16.gmra.mrb[0].mxu0 %v817
        %v1003 = vpop.f32.mrb[0].mxu0
        %v1004 = vadd.f32 %v643, %v1003
        %v1005 = vpop.f32.mrb[0].mxu0
        %v1006 = vadd.f32 %v643, %v1005
        %v1007 = vpop.f32.mrb[0].mxu0
        %v1008 = vadd.f32 %v648, %v1007
        %v1009 = vpop.f32.mrb[0].mxu0
        %v1010 = vadd.f32 %v648, %v1009
        %1011 = vdwg.mxu0
        %v1012 = vmax.f32 %v854, 0.0
        %v1013 = vmax.f32 %v856, 0.0
        %v1014 = vmax.f32 %v858, 0.0
        %v1015 = vmax.f32 %v860, 0.0
        %v1016 = vmax.f32 %v864, 0.0
        %v1017 = vmax.f32 %v866, 0.0
        %v1018 = vmax.f32 %v868, 0.0
        %v1019 = vmax.f32 %v870, 0.0
        %v1020 = vmax.f32 %v874, 0.0
        %v1021 = vmax.f32 %v876, 0.0
        %v1022 = vmax.f32 %v878, 0.0
        %v1023 = vmax.f32 %v880, 0.0
        %v1024 = vmax.f32 %v884, 0.0
        %v1025 = vmax.f32 %v886, 0.0
        %v1026 = vmax.f32 %v888, 0.0
        %v1027 = vmax.f32 %v890, 0.0
        %v1028 = vmax.f32 %v894, 0.0
        %v1029 = vmax.f32 %v896, 0.0
        %v1030 = vmax.f32 %v898, 0.0
        %v1031 = vmax.f32 %v900, 0.0
        %v1032 = vmax.f32 %v904, 0.0
        %v1033 = vmax.f32 %v906, 0.0
        %v1034 = vmax.f32 %v908, 0.0
        %v1035 = vmax.f32 %v910, 0.0
        %v1036 = vmax.f32 %v914, 0.0
        %v1037 = vmax.f32 %v916, 0.0
        %v1038 = vmax.f32 %v918, 0.0
        %v1039 = vmax.f32 %v920, 0.0
        %v1040 = vmax.f32 %v924, 0.0
        %v1041 = vmax.f32 %v926, 0.0
        %v1042 = vmax.f32 %v928, 0.0
        %v1043 = vmax.f32 %v930, 0.0
        %v1044 = vmax.f32 %v934, 0.0
        %v1045 = vmax.f32 %v936, 0.0
        %v1046 = vmax.f32 %v938, 0.0
        %v1047 = vmax.f32 %v940, 0.0
        %v1048 = vmax.f32 %v944, 0.0
        %v1049 = vmax.f32 %v946, 0.0
        %v1050 = vmax.f32 %v948, 0.0
        %v1051 = vmax.f32 %v950, 0.0
        %v1052 = vmax.f32 %v954, 0.0
        %v1053 = vmax.f32 %v956, 0.0
        %v1054 = vmax.f32 %v958, 0.0
        %v1055 = vmax.f32 %v960, 0.0
        %v1056 = vmax.f32 %v964, 0.0
        %v1057 = vmax.f32 %v966, 0.0
        %v1058 = vmax.f32 %v968, 0.0
        %v1059 = vmax.f32 %v970, 0.0
        %v1060 = vmax.f32 %v974, 0.0
        %v1061 = vmax.f32 %v976, 0.0
        %v1062 = vmax.f32 %v978, 0.0
        %v1063 = vmax.f32 %v980, 0.0
        %v1064 = vmax.f32 %v984, 0.0
        %v1065 = vmax.f32 %v986, 0.0
        %v1066 = vmax.f32 %v988, 0.0
        %v1067 = vmax.f32 %v990, 0.0
        %v1068 = vmax.f32 %v994, 0.0
        %v1069 = vmax.f32 %v996, 0.0
        %v1070 = vmax.f32 %v998, 0.0
        %v1071 = vmax.f32 %v1000, 0.0
        %v1072 = vmax.f32 %v1004, 0.0
        %v1073 = vmax.f32 %v1006, 0.0
        %v1074 = vmax.f32 %v1008, 0.0
        %v1075 = vmax.f32 %v1010, 0.0
        %v1076 = vpack.c.bf16 %v1014, %v1012
        %v1077 = vpack.c.bf16 %v1015, %v1013
        %v1078 = vpack.c.bf16 %v1018, %v1016
        %v1079 = vpack.c.bf16 %v1019, %v1017
        %v1080 = vpack.c.bf16 %v1022, %v1020
        %v1081 = vpack.c.bf16 %v1023, %v1021
        %v1082 = vpack.c.bf16 %v1026, %v1024
        %v1083 = vpack.c.bf16 %v1027, %v1025
        %v1084 = vpack.c.bf16 %v1030, %v1028
        %v1085 = vpack.c.bf16 %v1031, %v1029
        %v1086 = vpack.c.bf16 %v1034, %v1032
        %v1087 = vpack.c.bf16 %v1035, %v1033
        %v1088 = vpack.c.bf16 %v1038, %v1036
        %v1089 = vpack.c.bf16 %v1039, %v1037
        %v1090 = vpack.c.bf16 %v1042, %v1040
        %v1091 = vpack.c.bf16 %v1043, %v1041
        %v1092 = vpack.c.bf16 %v1046, %v1044
        %v1093 = vpack.c.bf16 %v1047, %v1045
        %v1094 = vpack.c.bf16 %v1050, %v1048
        %v1095 = vpack.c.bf16 %v1051, %v1049
        %v1096 = vpack.c.bf16 %v1054, %v1052
        %v1097 = vpack.c.bf16 %v1055, %v1053
        %v1098 = vpack.c.bf16 %v1058, %v1056
        %v1099 = vpack.c.bf16 %v1059, %v1057
        %v1100 = vpack.c.bf16 %v1062, %v1060
        %v1101 = vpack.c.bf16 %v1063, %v1061
        %v1102 = vpack.c.bf16 %v1066, %v1064
        %v1103 = vpack.c.bf16 %v1067, %v1065
        %v1104 = vpack.c.bf16 %v1070, %v1068
        %v1105 = vpack.c.bf16 %v1071, %v1069
        %v1106 = vpack.c.bf16 %v1074, %v1072
        %v1107 = vpack.c.bf16 %v1075, %v1073
        %v1108 = vld [vmem:[%s4] sm:$0xff]
        %v1110 = vunpack.c.l.b16 %v1108
        %v1111 = vunpack.c.h.b16 %v1108
        %v1112 = vpack.c.b16 %v1110, %v1110
        %v1113 = vpack.c.b16 %v1111, %v1111
        %1116 = vmatprep.subr.bf16.mxu0 %v1077
        %1117 = vmatpush1.bf16.msra.mxu0 %v1076
        %1118 = vmatprep.subr.bf16.mxu0 %v1079
        %1119 = vmatpush1.bf16.msra.mxu0 %v1078
        %1120 = vmatprep.subr.bf16.mxu0 %v1081
        %1121 = vmatpush1.bf16.msra.mxu0 %v1080
        %1122 = vmatprep.subr.bf16.mxu0 %v1083
        %1123 = vmatpush1.bf16.msra.mxu0 %v1082
        %1124 = vmatprep.subr.bf16.mxu0 %v1085
        %1125 = vmatpush1.bf16.msra.mxu0 %v1084
        %1126 = vmatprep.subr.bf16.mxu0 %v1087
        %1127 = vmatpush1.bf16.msra.mxu0 %v1086
        %1128 = vmatprep.subr.bf16.mxu0 %v1089
        %1129 = vmatpush1.bf16.msra.mxu0 %v1088
        %1130 = vmatprep.subr.bf16.mxu0 %v1091
        %1131 = vmatpush1.bf16.msra.mxu0 %v1090
        %1132 = vmatprep.subr.bf16.mxu0 %v1093
        %1133 = vmatpush1.bf16.msra.mxu0 %v1092
        %1134 = vmatprep.subr.bf16.mxu0 %v1095
        %1135 = vmatpush1.bf16.msra.mxu0 %v1094
        %1136 = vmatprep.subr.bf16.mxu0 %v1097
        %1137 = vmatpush1.bf16.msra.mxu0 %v1096
        %1138 = vmatprep.subr.bf16.mxu0 %v1099
        %1139 = vmatpush1.bf16.msra.mxu0 %v1098
        %1140 = vmatprep.subr.bf16.mxu0 %v1101
        %1141 = vmatpush1.bf16.msra.mxu0 %v1100
        %1142 = vmatprep.subr.bf16.mxu0 %v1103
        %1143 = vmatpush1.bf16.msra.mxu0 %v1102
        %1144 = vmatprep.subr.bf16.mxu0 %v1105
        %1145 = vmatpush1.bf16.msra.mxu0 %v1104
        %1146 = vmatprep.subr.bf16.mxu0 %v1107
        %1147 = vmatpush1.bf16.msra.mxu0 %v1106
        %1148 = vmatprep.mubr.bf16.mxu0 %v1113
        %1149 = vmatmul.mubr.bf16.gmra.mrb[0].mxu0 %v1112
        %v1150 = vpop.f32.mrb[0].mxu0
        %v1151 = vadd.f32 0.0, %v1150
        %v1152 = vpop.f32.mrb[0].mxu0
        %v1153 = vadd.f32 0.0, %v1152
        %v1154 = vpop.f32.mrb[0].mxu0
        %v1155 = vpop.f32.mrb[0].mxu0
        %1156 = vdwg.mxu0
        %v1157 = vld [vmem:[#allocation2] sm:$0x1]
        %1159 = vset.pattern.permute.xlu0 0
        %1160 = vperm.xlu0 %1159, %v1157
        %v1161 = vpop.permute.xlu0 %1160
        %v1163 = vlaneseq
        %v1164 = vshrl.u32 %v1163, 7
        %v1165 = vsub.s32 0, %v1164
        %v1166 = vrot.slane %v1161, %v1165
        %v1167 = vadd.f32 %v1151, %v1166
        %v1168 = vadd.f32 %v1153, %v1166
        %v1171 = vcombine.low %v1167, %v1168
        %v1173 = vunpack.c.l.s4 1966171168
        %v1174 = vunpack.c.0.s8 %v1173
        %v1175 = vlaneseq
        %v1176 = vshrl.u32 %v1175, 7
        %v1177 = vsub.s32 %v1174, %v1176
        %v1178 = vrot.slane %v1171, %v1177
        %v1180 = vunpack.c.l.s4 1966171168
        %v1181 = vunpack.c.0.s8 %v1180
        %v1182 = vlaneseq
        %v1183 = vshrl.u32 %v1182, 7
        %v1184 = vsub.s32 %v1181, %v1183
        %v1185 = vrot.slane %v1178, %v1184
        %v1187 = vlaneseq
        %vm1188 = vcmp.ge.s32.totalorder %v1187, 0
        %vm1189 = vcmp.lt.s32.totalorder %v1187, 256
        %vm1190 = vmand %vm1188, %vm1189
        %1191 = vst.msk [vmem:[%s399] sm:$0x3] %vm1190, %v1185
        %s1192 = smul.u32 2, %s19
        %p1193 = scmp.lt.s32.totalorder %s1192, 3
        %s1194 = scalar_select %p1193, %s1192, 3
        %s1195 = scalar_lea.vmem %s6, %s1194
        // Predicated region
        $region121: #{mlp2layers_v1.1} parent=111 // pred_check
          %p1196 = pneg %p173
        $region122: #{mlp2layers_v1.1} parent=111 // pred_check_branch
          %1198 = sbr.rel (%p1196) target = $region124
        $region123: #{mlp2layers_v1.1} parent=111 // pred_region
          %s1199 = smul.u32 2, %s19
        $region124: #{mlp2layers_v1.1} parent=111 // pred_fallthru
          _
      $region112: #{mlp2layers_v1.1} parent=5 // pred_fallthru
        _
      %p1200 = scmp.le.s32.totalorder 2, %s14
      // Predicated region
      $region125: #{mlp2layers_v1.1} parent=5 // pred_check
        %p1201 = pneg %p1200
      $region126: #{mlp2layers_v1.1} parent=5 // pred_check_branch
        %1203 = sbr.rel (%p1201) target = $region128
      $region127: #{mlp2layers_v1.1} parent=5 // pred_region
        %s1204 = ssub.s32 %s14, 2
        // Predicated region
        $region129: #{mlp2layers_v1.1} parent=127 // pred_check
          %p1205 = pneg %p179
        $region130: #{mlp2layers_v1.1} parent=127 // pred_check_branch
          %1207 = sbr.rel (%p1205) target = $region132
        $region131: #{mlp2layers_v1.1} parent=127 // pred_region
          %s1208 = smul.u32 2, %s20
          %p1209 = scmp.lt.s32.totalorder %s1208, 3
          %s1210 = scalar_select %p1209, %s1208, 3
          %s1211 = scalar_lea.vmem %s6, %s1210
        $region132: #{mlp2layers_v1.1} parent=127 // pred_fallthru
          _
      $region128: #{mlp2layers_v1.1} parent=5 // pred_fallthru
        _
    $region6: #{mlp2layers_v1.1} parent=1 // loop_footer
      %s18 = sadd.s32 1, %s14
    $region7: #{mlp2layers_v1.1} parent=1 // loop_footer_branch
      %13 = sbr.rel target = $region3
    $region8: #{mlp2layers_v1.1} parent=1 // loop_exit
      _

</llo_original>
